<compile_context>
chip_gen: v7x
topology: tpu7x:2x2x1
jax: 0.10.0
libtpu: 0.0.40
codegen_flags: <defaults>
</compile_context>

<pallas_src>
import math

import jax
import jax.numpy as jnp
from jax.experimental import pallas as pl
from jax.experimental.pallas import tpu as pltpu


def _round_up(a, b):
    return (a + b - 1) // b * b


def _deconv_prelu_kernel(p_ref, w_ref, b_ref, a_ref, o_ref):
    # p_ref: (T*T*Cin, TILE)        VMEM  polyphase patch rows (lanes = batch*spatial)
    # w_ref: (s*s*Cout, T*T*Cin)    VMEM  combined polyphase weight
    # b_ref: (s*s*Cout, 1)          VMEM  bias (tiled per phase), broadcasts over lanes
    # a_ref: (1,)                   SMEM  PReLU negative slope
    # o_ref: (s*s*Cout, TILE)       VMEM  lane-dense output
    acc = jnp.dot(w_ref[...], p_ref[...], preferred_element_type=jnp.float32)
    acc = acc + b_ref[...]
    a = a_ref[0]
    o_ref[...] = jnp.where(acc >= 0.0, acc, a * acc).astype(o_ref.dtype)


def deconv_prelu(x, w_t, bias, alpha, *, kernel=3, stride=2, padding=1,
                 lane_tile=2048):
    """ConvTranspose2d(kernel, stride, padding, output_padding=stride-1) + PReLU.

    x:     (N, Cin, H, W)     float32, NCHW
    w_t:   (Cin, Cout, K, K)  PyTorch ConvTranspose2d weight layout
    bias:  (Cout,)
    alpha: scalar PReLU slope (nn.PReLU() default num_parameters=1)
    """
    N, Cin, H, W = x.shape
    Cout = w_t.shape[1]
    K, s, p = kernel, stride, padding
    # Polyphase path assumes "same-ratio" transposed conv (holds for module defaults).
    assert K == 2 * p + 1, "requires kernel == 2*padding + 1"

    # ---- polyphase tap enumeration (per spatial axis) -----------------------
    # output index oh = s*r + ph uses kernel row kh iff kh == ph + p - s*d for
    # some integer shift d (input row ih = r + d).
    tap_k = {}
    d_set = set()
    for ph in range(s):
        for kk in range(K):
            if (ph + p - kk) % s == 0:
                d = (ph + p - kk) // s
                d_set.add(d)
                tap_k[(ph, d)] = kk
    d_list = sorted(d_set)
    T = len(d_list)
    pad_lo = max(0, -d_list[0])
    pad_hi = max(0, d_list[-1])

    # ---- combined polyphase weight: (s*s*Cout, T*T*Cin) ---------------------
    Wc = jnp.zeros((s * s * Cout, T * T * Cin), jnp.float32)
    for ph in range(s):
        for pw in range(s):
            for ti, dh in enumerate(d_list):
                for tj, dw in enumerate(d_list):
                    kh = tap_k.get((ph, dh))
                    kw = tap_k.get((pw, dw))
                    if kh is None or kw is None:
                        continue
                    r0 = (ph * s + pw) * Cout
                    c0 = (ti * T + tj) * Cin
                    Wc = Wc.at[r0:r0 + Cout, c0:c0 + Cin].set(
                        w_t[:, :, kh, kw].T.astype(jnp.float32))

    b_tiled = jnp.tile(bias.reshape(Cout).astype(jnp.float32), s * s)
    b_tiled = b_tiled.reshape(s * s * Cout, 1)
    a_arr = jnp.asarray(alpha, jnp.float32).reshape(1)

    # ---- polyphase patch rows: (T*T*Cin, N*H*W) ------------------------------
    xp = jnp.pad(x.astype(jnp.float32),
                 ((0, 0), (0, 0), (pad_lo, pad_hi), (pad_lo, pad_hi)))
    shifts = [xp[:, :, pad_lo + dh: pad_lo + dh + H,
                 pad_lo + dw: pad_lo + dw + W]
              for dh in d_list for dw in d_list]
    P = jnp.concatenate(shifts, axis=1)                 # (N, T*T*Cin, H, W)
    S_total = N * H * W
    P = P.transpose(1, 0, 2, 3).reshape(T * T * Cin, S_total)

    TILE = min(lane_tile, _round_up(S_total, 128))      # lane-dense tile
    S_pad = _round_up(S_total, TILE)
    if S_pad != S_total:
        P = jnp.pad(P, ((0, 0), (0, S_pad - S_total)))

    Krows = T * T * Cin
    Mrows = s * s * Cout

    y = pl.pallas_call(
        _deconv_prelu_kernel,
        out_shape=jax.ShapeDtypeStruct((Mrows, S_pad), x.dtype),
        grid=(S_pad // TILE,),
        in_specs=[
            pl.BlockSpec((Krows, TILE), lambda i: (0, i)),      # patches
            pl.BlockSpec((Mrows, Krows), lambda i: (0, 0)),     # weights (VMEM)
            pl.BlockSpec((Mrows, 1), lambda i: (0, 0)),         # bias    (VMEM)
            pl.BlockSpec(memory_space=pltpu.MemorySpace.SMEM),  # alpha   (SMEM)
        ],
        out_specs=pl.BlockSpec((Mrows, TILE), lambda i: (0, i)),
        compiler_params=pltpu.CompilerParams(
            dimension_semantics=("parallel",)),
    )(P, Wc, b_tiled, a_arr)

    # ---- de-interleave phases back to (N, Cout, H*s, W*s) -------------------
    y = y[:, :S_total].reshape(s, s, Cout, N, H, W)      # (ph, pw, co, n, r, c)
    y = y.transpose(3, 2, 4, 0, 5, 1)                    # (n, co, r, ph, c, pw)
    return y.reshape(N, Cout, H * s, W * s)


def _reference(x, w_t, bias, alpha, *, kernel=3, stride=2, padding=1):
    # Independent JAX reference: transposed conv via lhs_dilation conv.
    K = kernel
    out_pad = stride - 1
    pad_lo = K - 1 - padding
    pad_hi = K - 1 - padding + out_pad
    w_oihw = jnp.transpose(w_t[:, :, ::-1, ::-1], (1, 0, 2, 3))  # (Cout, Cin, K, K)
    y = jax.lax.conv_general_dilated(
        x, w_oihw, window_strides=(1, 1),
        padding=((pad_lo, pad_hi), (pad_lo, pad_hi)),
        lhs_dilation=(stride, stride),
        dimension_numbers=('NCHW', 'OIHW', 'NCHW'))
    y = y + bias[None, :, None, None]
    return jnp.where(y >= 0.0, y, alpha * y)


if __name__ == "__main__":
    key = jax.random.PRNGKey(0)
    k1, k2, k3 = jax.random.split(key, 3)

    N, Cin, H, W = 2, 4, 16, 16
    Cout, K, S, P = 8, 3, 2, 1

    x = jax.random.normal(k1, (N, Cin, H, W), jnp.float32)

    # Deterministic synthetic params (shapes match nn.ConvTranspose2d / nn.PReLU).
    bound = 1.0 / math.sqrt(Cin * K * K)
    w_t = jax.random.uniform(k2, (Cin, Cout, K, K), jnp.float32, -bound, bound)
    bias = jax.random.uniform(k3, (Cout,), jnp.float32, -bound, bound)
    alpha = jnp.float32(0.25)  # nn.PReLU() default init

    out = deconv_prelu(x, w_t, bias, alpha, kernel=K, stride=S, padding=P)
    out = jax.block_until_ready(out)
    assert out.shape == (N, Cout, 2 * H, 2 * W), out.shape

    ref = _reference(x, w_t, bias, alpha, kernel=K, stride=S, padding=P)
    # Tolerance leaves headroom for MXU rounding modes of the f32 matmul path.
    assert jnp.allclose(out, ref, atol=5e-3, rtol=5e-3), \
        float(jnp.max(jnp.abs(out - ref)))

    print("KERNEL_OK")
</pallas_src>

<mosaic_0001>
module attributes {stable_mosaic.version = 11 : i64} {
  func.func @_deconv_prelu_kernel(%arg0: i32, %arg1: memref<16x512xf32, #tpu.memory_space<vmem>>, %arg2: memref<32x16xf32, #tpu.memory_space<vmem>>, %arg3: memref<32x1xf32, #tpu.memory_space<vmem>>, %arg4: memref<1xf32, #tpu.memory_space<smem>>, %arg5: memref<32x512xf32, #tpu.memory_space<vmem>>) attributes {dimension_semantics = [#tpu.dimension_semantics<parallel>], iteration_bounds = array<i64: 1>, scalar_prefetch = 0 : i64, scratch_operands = 0 : i64, tpu.core_type = #tpu.core_type<tc>, window_params = [{transform_indices = @transform_0, window_bounds = array<i64: 16, 512>}, {pipeline_mode = #tpu.pipeline_mode<synchronous>, transform_indices = @transform_1, window_bounds = array<i64: 32, 16>}, {pipeline_mode = #tpu.pipeline_mode<synchronous>, transform_indices = @transform_2, window_bounds = array<i64: 32, 1>}, {transform_indices = @transform_3, window_bounds = array<i64: 1>}, {transform_indices = @transform_4, window_bounds = array<i64: 32, 512>}]} {
    %c0 = arith.constant 0 : index
    %c0_0 = arith.constant 0 : index
    %0 = vector.load %arg2[%c0, %c0_0] : memref<32x16xf32, #tpu.memory_space<vmem>>, vector<32x16xf32>
    %c0_1 = arith.constant 0 : index
    %c0_2 = arith.constant 0 : index
    %1 = vector.load %arg1[%c0_1, %c0_2] : memref<16x512xf32, #tpu.memory_space<vmem>>, vector<16x512xf32>
    %cst = arith.constant dense<0.000000e+00> : vector<32x512xf32>
    %2 = tpu.matmul %0, %1, %cst {dimension_numbers = #tpu.dot_dimension_numbers<[1], [0], [0], [1], [0, 0, 1, 1], [], []>} : vector<32x16xf32>, vector<16x512xf32>, vector<32x512xf32> -> vector<32x512xf32>
    %c0_3 = arith.constant 0 : index
    %c0_4 = arith.constant 0 : index
    %3 = vector.load %arg3[%c0_3, %c0_4] : memref<32x1xf32, #tpu.memory_space<vmem>>, vector<32x1xf32>
    %4 = vector.broadcast %3 : vector<32x1xf32> to vector<32x512xf32>
    %5 = arith.addf %2, %4 : vector<32x512xf32>
    %c0_5 = arith.constant 0 : index
    %6 = memref.load %arg4[%c0_5] : memref<1xf32, #tpu.memory_space<smem>>
    %cst_6 = arith.constant 0.000000e+00 : f32
    %7 = vector.broadcast %cst_6 : f32 to vector<32x512xf32>
    %8 = arith.cmpf oge, %5, %7 : vector<32x512xf32>
    %9 = vector.broadcast %6 : f32 to vector<32x512xf32>
    %10 = arith.mulf %9, %5 : vector<32x512xf32>
    %11 = arith.select %8, %5, %10 : vector<32x512xi1>, vector<32x512xf32>
    %c0_7 = arith.constant 0 : index
    %c0_8 = arith.constant 0 : index
    %12 = vector.load %arg5[%c0_7, %c0_8] : memref<32x512xf32, #tpu.memory_space<vmem>>, vector<32x512xf32>
    tpu.vector_store %arg5[%c0_7, %c0_8], %11 {strides = array<i32>} : memref<32x512xf32, #tpu.memory_space<vmem>>, vector<32x512xf32>,
    return
  }
  func.func @transform_0(%arg0: i32) -> (i32, i32) {
    %c0_i32 = arith.constant 0 : i32
    %c0_i32_0 = arith.constant 0 : i32
    return %c0_i32, %arg0 : i32, i32
  }
  func.func @transform_1(%arg0: i32) -> (i32, i32) {
    %c0_i32 = arith.constant 0 : i32
    %c0_i32_0 = arith.constant 0 : i32
    %c0_i32_1 = arith.constant 0 : i32
    return %c0_i32, %c0_i32_0 : i32, i32
  }
  func.func @transform_2(%arg0: i32) -> (i32, i32) {
    %c0_i32 = arith.constant 0 : i32
    %c0_i32_0 = arith.constant 0 : i32
    %c0_i32_1 = arith.constant 0 : i32
    return %c0_i32, %c0_i32_0 : i32, i32
  }
  func.func @transform_3(%arg0: i32) -> i32 {
    %c0_i32 = arith.constant 0 : i32
    %c0_i32_0 = arith.constant 0 : i32
    return %c0_i32 : i32
  }
  func.func @transform_4(%arg0: i32) -> (i32, i32) {
    %c0_i32 = arith.constant 0 : i32
    %c0_i32_0 = arith.constant 0 : i32
    return %c0_i32, %arg0 : i32, i32
  }
}

</mosaic_0001>

<llo_original>
// kernel: tpu_custom_call.1
$region0: #{tpu_custom_call.1}
  #allocation0 [shape = 'u32[]', space=smem, size = 0x4, offset = 0x4, fixed_abs, tag = 'smem constant byte address 0x4 - core index']
  #allocation1 [shape = 'u32[144,128]{1,0:T(1,128)}', space=vmem, size = 0x12000, scoped, tag = 'internal scratch']
  #allocation2 [shape = 'f32[1]{0:T(128)S(6)}', space=smem, size = 0x200, scoped, tag = 'scoped memory for tpu_custom_call.1']
  %s0 = inlined_call_operand.vmem [shape: f32[16,512], index: 0, kind: input, shape index: {}]
  %s1 = inlined_call_operand.vmem [shape: f32[32,16], index: 1, kind: input, shape index: {}]
  %s2 = inlined_call_operand.vmem [shape: f32[32,1], index: 2, kind: input, shape index: {}]
  %s3 = inlined_call_operand.<no memory space> [shape: f32[1], index: 3, kind: input, shape index: {}]
  %s4 = inlined_call_operand.hbm [shape: f32[32,512], index: 4, kind: output, shape index: {}]
  %s5 = sld [smem:[#allocation0]]
  $region26: #{tpu_custom_call.1} parent=0
    _
  %s7 = ssub.s32 1, %s5
  %s8 = scalar_select 0, %s7, %s5
  %9 = sst [smem:[#allocation2]] %s3
  $region1: #{tpu_custom_call.1} parent=0
    #allocation3 [shape = 'u8[65536]{0}', space=vmem, size = 0x10000, scoped, tag = 'output window, operand 0, single buffered']
    #allocation4 [shape = 's32[1]{0}', space=sflag, size = 0x4, scoped, tag = 'scoped memory for tpu_custom_call.1']
    %10 = vsyncpa [#allocation4], 0
    // Predicated region
    $region2: #{tpu_custom_call.1} parent=1 // pred_check
      _
    $region3: #{tpu_custom_call.1} parent=1 // pred_check_branch
      %12 = sbr.rel (0) target = $region5
    $region4: #{tpu_custom_call.1} parent=1 // pred_region
      _
    $region5: #{tpu_custom_call.1} parent=1 // pred_fallthru
      _
    // Predicated region
    $region6: #{tpu_custom_call.1} parent=1 // pred_check
      _
    $region7: #{tpu_custom_call.1} parent=1 // pred_check_branch
      %14 = sbr.rel (0) target = $region9
    $region8: #{tpu_custom_call.1} parent=1 // pred_region
      _
    $region9: #{tpu_custom_call.1} parent=1 // pred_fallthru
      _
    // Predicated region
    $region10: #{tpu_custom_call.1} parent=1 // pred_check
      _
    $region11: #{tpu_custom_call.1} parent=1 // pred_check_branch
      %16 = sbr.rel (0) target = $region13
    $region12: #{tpu_custom_call.1} parent=1 // pred_region
      _
    $region13: #{tpu_custom_call.1} parent=1 // pred_fallthru
      _
    // Predicated region
    $region14: #{tpu_custom_call.1} parent=1 // pred_check
      _
    $region15: #{tpu_custom_call.1} parent=1 // pred_check_branch
      %18 = sbr.rel (0) target = $region17
    $region16: #{tpu_custom_call.1} parent=1 // pred_region
      _
    $region17: #{tpu_custom_call.1} parent=1 // pred_fallthru
      _
    %v19 = vld [vmem:[%s1] sm:$0xff]
    %v20 = vld [vmem:[%s1 + $0x8] sm:$0xff]
    %v21 = vld [vmem:[%s1 + $0x10] sm:$0xff]
    %v22 = vld [vmem:[%s1 + $0x18] sm:$0xff]
    %v23 = vld [vmem:[%s0] sm:$0xff]
    %v24 = vld [vmem:[%s0 + $0x8] sm:$0xff]
    %v25 = vld [vmem:[%s0 + $0x10] sm:$0xff]
    %v26 = vld [vmem:[%s0 + $0x18] sm:$0xff]
    %v27 = vld [vmem:[%s0 + $0x20] sm:$0xff]
    %v28 = vld [vmem:[%s0 + $0x28] sm:$0xff]
    %v29 = vld [vmem:[%s0 + $0x30] sm:$0xff]
    %v30 = vld [vmem:[%s0 + $0x38] sm:$0xff]
    %v31 = vld [vmem:[%s2] sm:$0xff]
    %v32 = vld [vmem:[%s2 + $0x8] sm:$0xff]
    %v33 = vld [vmem:[%s2 + $0x10] sm:$0xff]
    %v34 = vld [vmem:[%s2 + $0x18] sm:$0xff]
    %36 = vset.pattern.permute.xlu0 0
    %37 = vperm.xlu0 %36, %v31
    %v38 = vpop.permute.xlu0 %37
    %41 = vset.pattern.permute.xlu0 0
    %42 = vperm.xlu0 %41, %v32
    %v43 = vpop.permute.xlu0 %42
    %46 = vset.pattern.permute.xlu0 0
    %47 = vperm.xlu0 %46, %v33
    %v48 = vpop.permute.xlu0 %47
    %51 = vset.pattern.permute.xlu0 0
    %52 = vperm.xlu0 %51, %v34
    %v53 = vpop.permute.xlu0 %52
    %vm55 = vcmask 130048
    %v57 = vsel %vm55, %v19, 0
    %v60 = vsel %vm55, %v20, 0
    %v63 = vsel %vm55, %v21, 0
    %v66 = vsel %vm55, %v22, 0
    %68 = vmatprep.subr.mxu0 %v24
    %69 = vmatpush1.msra.mxu0 %v23
    %70 = vmatprep.subr.mxu0 %v28
    %71 = vmatpush1.msra.mxu0 %v27
    %72 = vmatprep.subr.mxu0 0.0
    %73 = vmatpush1.msra.mxu0 0.0
    %74 = vmatprep.subr.mxu0 0.0
    %75 = vmatpush1.msra.mxu0 0.0
    %76 = vmatprep.subr.mxu0 0.0
    %77 = vmatpush1.msra.mxu0 0.0
    %78 = vmatprep.subr.mxu0 0.0
    %79 = vmatpush1.msra.mxu0 0.0
    %80 = vmatprep.subr.mxu0 0.0
    %81 = vmatpush1.msra.mxu0 0.0
    %82 = vmatprep.subr.mxu0 0.0
    %83 = vmatpush1.msra.mxu0 0.0
    %84 = vmatprep.subr.mxu0 0.0
    %85 = vmatpush1.msra.mxu0 0.0
    %86 = vmatprep.subr.mxu0 0.0
    %87 = vmatpush1.msra.mxu0 0.0
    %88 = vmatprep.subr.mxu0 0.0
    %89 = vmatpush1.msra.mxu0 0.0
    %90 = vmatprep.subr.mxu0 0.0
    %91 = vmatpush1.msra.mxu0 0.0
    %92 = vmatprep.subr.mxu0 0.0
    %93 = vmatpush1.msra.mxu0 0.0
    %94 = vmatprep.subr.mxu0 0.0
    %95 = vmatpush1.msra.mxu0 0.0
    %96 = vmatprep.subr.mxu0 0.0
    %97 = vmatpush1.msra.mxu0 0.0
    %98 = vmatprep.subr.mxu0 0.0
    %99 = vmatpush1.msra.mxu0 0.0
    %100 = vmatprep.subr.mxu0 0.0
    %101 = vmatpush1.msra.mxu0 0.0
    %102 = vmatprep.subr.mxu0 0.0
    %103 = vmatpush1.msra.mxu0 0.0
    %104 = vmatprep.subr.mxu0 0.0
    %105 = vmatpush1.msra.mxu0 0.0
    %106 = vmatprep.subr.mxu0 0.0
    %107 = vmatpush1.msra.mxu0 0.0
    %108 = vmatprep.subr.mxu0 0.0
    %109 = vmatpush1.msra.mxu0 0.0
    %110 = vmatprep.subr.mxu0 0.0
    %111 = vmatpush1.msra.mxu0 0.0
    %112 = vmatprep.subr.mxu0 0.0
    %113 = vmatpush1.msra.mxu0 0.0
    %114 = vmatprep.subr.mxu0 0.0
    %115 = vmatpush1.msra.mxu0 0.0
    %116 = vmatprep.subr.mxu0 0.0
    %117 = vmatpush1.msra.mxu0 0.0
    %118 = vmatprep.subr.mxu0 0.0
    %119 = vmatpush1.msra.mxu0 0.0
    %120 = vmatprep.subr.mxu0 0.0
    %121 = vmatpush1.msra.mxu0 0.0
    %122 = vmatprep.subr.mxu0 0.0
    %123 = vmatpush1.msra.mxu0 0.0
    %124 = vmatprep.subr.mxu0 0.0
    %125 = vmatpush1.msra.mxu0 0.0
    %126 = vmatprep.subr.mxu0 0.0
    %127 = vmatpush1.msra.mxu0 0.0
    %128 = vmatprep.subr.mxu0 0.0
    %129 = vmatpush1.msra.mxu0 0.0
    %130 = vmatprep.subr.mxu0 0.0
    %131 = vmatpush1.msra.mxu0 0.0
    %132 = vmatprep.mubr.f32.mxu0 0.0
    %133 = vmatmul.mubr.f32.gmra.mrb[0].mxu0 %v57
    %v134 = vpop.f32.mrb[0].mxu0
    %v135 = vadd.f32 %v38, %v134
    %v136 = vpop.f32.mrb[0].mxu0
    %v137 = vadd.f32 %v38, %v136
    %138 = vmatprep.mubr.f32.mxu0 0.0
    %139 = vmatmul.mubr.f32.gmra.mrb[0].mxu0 %v60
    %v140 = vpop.f32.mrb[0].mxu0
    %v141 = vadd.f32 %v43, %v140
    %v142 = vpop.f32.mrb[0].mxu0
    %v143 = vadd.f32 %v43, %v142
    %144 = vmatprep.mubr.f32.mxu0 0.0
    %145 = vmatmul.mubr.f32.gmra.mrb[0].mxu0 %v63
    %v146 = vpop.f32.mrb[0].mxu0
    %v147 = vadd.f32 %v48, %v146
    %v148 = vpop.f32.mrb[0].mxu0
    %v149 = vadd.f32 %v48, %v148
    %150 = vmatprep.mubr.f32.mxu0 0.0
    %151 = vmatmul.mubr.f32.gmra.mrb[0].mxu0 %v66
    %v152 = vpop.f32.mrb[0].mxu0
    %v153 = vadd.f32 %v53, %v152
    %v154 = vpop.f32.mrb[0].mxu0
    %v155 = vadd.f32 %v53, %v154
    %156 = vdwg.mxu0
    %157 = vmatprep.subr.mxu0 %v26
    %158 = vmatpush1.msra.mxu0 %v25
    %159 = vmatprep.subr.mxu0 %v30
    %160 = vmatpush1.msra.mxu0 %v29
    %161 = vmatprep.subr.mxu0 0.0
    %162 = vmatpush1.msra.mxu0 0.0
    %163 = vmatprep.subr.mxu0 0.0
    %164 = vmatpush1.msra.mxu0 0.0
    %165 = vmatprep.subr.mxu0 0.0
    %166 = vmatpush1.msra.mxu0 0.0
    %167 = vmatprep.subr.mxu0 0.0
    %168 = vmatpush1.msra.mxu0 0.0
    %169 = vmatprep.subr.mxu0 0.0
    %170 = vmatpush1.msra.mxu0 0.0
    %171 = vmatprep.subr.mxu0 0.0
    %172 = vmatpush1.msra.mxu0 0.0
    %173 = vmatprep.subr.mxu0 0.0
    %174 = vmatpush1.msra.mxu0 0.0
    %175 = vmatprep.subr.mxu0 0.0
    %176 = vmatpush1.msra.mxu0 0.0
    %177 = vmatprep.subr.mxu0 0.0
    %178 = vmatpush1.msra.mxu0 0.0
    %179 = vmatprep.subr.mxu0 0.0
    %180 = vmatpush1.msra.mxu0 0.0
    %181 = vmatprep.subr.mxu0 0.0
    %182 = vmatpush1.msra.mxu0 0.0
    %183 = vmatprep.subr.mxu0 0.0
    %184 = vmatpush1.msra.mxu0 0.0
    %185 = vmatprep.subr.mxu0 0.0
    %186 = vmatpush1.msra.mxu0 0.0
    %187 = vmatprep.subr.mxu0 0.0
    %188 = vmatpush1.msra.mxu0 0.0
    %189 = vmatprep.subr.mxu0 0.0
    %190 = vmatpush1.msra.mxu0 0.0
    %191 = vmatprep.subr.mxu0 0.0
    %192 = vmatpush1.msra.mxu0 0.0
    %193 = vmatprep.subr.mxu0 0.0
    %194 = vmatpush1.msra.mxu0 0.0
    %195 = vmatprep.subr.mxu0 0.0
    %196 = vmatpush1.msra.mxu0 0.0
    %197 = vmatprep.subr.mxu0 0.0
    %198 = vmatpush1.msra.mxu0 0.0
    %199 = vmatprep.subr.mxu0 0.0
    %200 = vmatpush1.msra.mxu0 0.0
    %201 = vmatprep.subr.mxu0 0.0
    %202 = vmatpush1.msra.mxu0 0.0
    %203 = vmatprep.subr.mxu0 0.0
    %204 = vmatpush1.msra.mxu0 0.0
    %205 = vmatprep.subr.mxu0 0.0
    %206 = vmatpush1.msra.mxu0 0.0
    %207 = vmatprep.subr.mxu0 0.0
    %208 = vmatpush1.msra.mxu0 0.0
    %209 = vmatprep.subr.mxu0 0.0
    %210 = vmatpush1.msra.mxu0 0.0
    %211 = vmatprep.subr.mxu0 0.0
    %212 = vmatpush1.msra.mxu0 0.0
    %213 = vmatprep.subr.mxu0 0.0
    %214 = vmatpush1.msra.mxu0 0.0
    %215 = vmatprep.subr.mxu0 0.0
    %216 = vmatpush1.msra.mxu0 0.0
    %217 = vmatprep.subr.mxu0 0.0
    %218 = vmatpush1.msra.mxu0 0.0
    %219 = vmatprep.subr.mxu0 0.0
    %220 = vmatpush1.msra.mxu0 0.0
    %221 = vmatprep.mubr.f32.mxu0 0.0
    %222 = vmatmul.mubr.f32.gmra.mrb[0].mxu0 %v57
    %v223 = vpop.f32.mrb[0].mxu0
    %v224 = vadd.f32 %v38, %v223
    %v225 = vpop.f32.mrb[0].mxu0
    %v226 = vadd.f32 %v38, %v225
    %227 = vmatprep.mubr.f32.mxu0 0.0
    %228 = vmatmul.mubr.f32.gmra.mrb[0].mxu0 %v60
    %v229 = vpop.f32.mrb[0].mxu0
    %v230 = vadd.f32 %v43, %v229
    %v231 = vpop.f32.mrb[0].mxu0
    %v232 = vadd.f32 %v43, %v231
    %233 = vmatprep.mubr.f32.mxu0 0.0
    %234 = vmatmul.mubr.f32.gmra.mrb[0].mxu0 %v63
    %v235 = vpop.f32.mrb[0].mxu0
    %v236 = vadd.f32 %v48, %v235
    %v237 = vpop.f32.mrb[0].mxu0
    %v238 = vadd.f32 %v48, %v237
    %239 = vmatprep.mubr.f32.mxu0 0.0
    %240 = vmatmul.mubr.f32.gmra.mrb[0].mxu0 %v66
    %v241 = vpop.f32.mrb[0].mxu0
    %v242 = vadd.f32 %v53, %v241
    %v243 = vpop.f32.mrb[0].mxu0
    %v244 = vadd.f32 %v53, %v243
    %245 = vdwg.mxu0
    %s246 = sld [smem:[#allocation2]]
    %vm247 = vcmp.ge.f32.partialorder %v135, 0.0
    %vm248 = vcmp.ge.f32.partialorder %v137, 0.0
    %vm249 = vcmp.ge.f32.partialorder %v224, 0.0
    %vm250 = vcmp.ge.f32.partialorder %v226, 0.0
    %vm251 = vcmp.ge.f32.partialorder %v141, 0.0
    %vm252 = vcmp.ge.f32.partialorder %v143, 0.0
    %vm253 = vcmp.ge.f32.partialorder %v230, 0.0
    %vm254 = vcmp.ge.f32.partialorder %v232, 0.0
    %vm255 = vcmp.ge.f32.partialorder %v147, 0.0
    %vm256 = vcmp.ge.f32.partialorder %v149, 0.0
    %vm257 = vcmp.ge.f32.partialorder %v236, 0.0
    %vm258 = vcmp.ge.f32.partialorder %v238, 0.0
    %vm259 = vcmp.ge.f32.partialorder %v153, 0.0
    %vm260 = vcmp.ge.f32.partialorder %v155, 0.0
    %vm261 = vcmp.ge.f32.partialorder %v242, 0.0
    %vm262 = vcmp.ge.f32.partialorder %v244, 0.0
    %v263 = vstv %s246
    %v264 = vmul.f32 %v263, %v135
    %v265 = vmul.f32 %v263, %v137
    %v266 = vmul.f32 %v263, %v224
    %v267 = vmul.f32 %v263, %v226
    %v268 = vmul.f32 %v263, %v141
    %v269 = vmul.f32 %v263, %v143
    %v270 = vmul.f32 %v263, %v230
    %v271 = vmul.f32 %v263, %v232
    %v272 = vmul.f32 %v263, %v147
    %v273 = vmul.f32 %v263, %v149
    %v274 = vmul.f32 %v263, %v236
    %v275 = vmul.f32 %v263, %v238
    %v276 = vmul.f32 %v263, %v153
    %v277 = vmul.f32 %v263, %v155
    %v278 = vmul.f32 %v263, %v242
    %v279 = vmul.f32 %v263, %v244
    %v280 = vsel %vm247, %v135, %v264
    %v281 = vsel %vm248, %v137, %v265
    %v282 = vsel %vm249, %v224, %v266
    %v283 = vsel %vm250, %v226, %v267
    %v284 = vsel %vm251, %v141, %v268
    %v285 = vsel %vm252, %v143, %v269
    %v286 = vsel %vm253, %v230, %v270
    %v287 = vsel %vm254, %v232, %v271
    %v288 = vsel %vm255, %v147, %v272
    %v289 = vsel %vm256, %v149, %v273
    %v290 = vsel %vm257, %v236, %v274
    %v291 = vsel %vm258, %v238, %v275
    %v292 = vsel %vm259, %v153, %v276
    %v293 = vsel %vm260, %v155, %v277
    %v294 = vsel %vm261, %v242, %v278
    %v295 = vsel %vm262, %v244, %v279
    %296 = vst [vmem:[#allocation3] sm:$0xff] %v280
    %297 = vst [vmem:[#allocation3 + $0x8] sm:$0xff] %v281
    %298 = vst [vmem:[#allocation3 + $0x10] sm:$0xff] %v282
    %299 = vst [vmem:[#allocation3 + $0x18] sm:$0xff] %v283
    %300 = vst [vmem:[#allocation3 + $0x20] sm:$0xff] %v284
    %301 = vst [vmem:[#allocation3 + $0x28] sm:$0xff] %v285
    %302 = vst [vmem:[#allocation3 + $0x30] sm:$0xff] %v286
    %303 = vst [vmem:[#allocation3 + $0x38] sm:$0xff] %v287
    %304 = vst [vmem:[#allocation3 + $0x40] sm:$0xff] %v288
    %305 = vst [vmem:[#allocation3 + $0x48] sm:$0xff] %v289
    %306 = vst [vmem:[#allocation3 + $0x50] sm:$0xff] %v290
    %307 = vst [vmem:[#allocation3 + $0x58] sm:$0xff] %v291
    %308 = vst [vmem:[#allocation3 + $0x60] sm:$0xff] %v292
    %309 = vst [vmem:[#allocation3 + $0x68] sm:$0xff] %v293
    %310 = vst [vmem:[#allocation3 + $0x70] sm:$0xff] %v294
    %311 = vst [vmem:[#allocation3 + $0x78] sm:$0xff] %v295
    // Predicated region
    $region18: #{tpu_custom_call.1} parent=1 // pred_check
      _
    $region19: #{tpu_custom_call.1} parent=1 // pred_check_branch
      %313 = sbr.rel (0) target = $region21
    $region20: #{tpu_custom_call.1} parent=1 // pred_region
      %s315 = ssub.s32 2048, 2048
      %316 = vsyncadd [#allocation4], %s315
      %s317 = sshll.u32 [#allocation3], 4
      %s318 = int_to_ptr.vmem [resolvable:$true] %s317
      %323 = dma.vmem_to_hbm [thread:$0]  %s318, 2048, %s4, [#allocation4], 512, 512, 32
    $region21: #{tpu_custom_call.1} parent=1 // pred_fallthru
      _
    // Predicated region
    $region22: #{tpu_custom_call.1} parent=1 // pred_check
      _
    $region23: #{tpu_custom_call.1} parent=1 // pred_check_branch
      %325 = sbr.rel (0) target = $region25
    $region24: #{tpu_custom_call.1} parent=1 // pred_region
      %326 = dma.done [#allocation4], 2048
    $region25: #{tpu_custom_call.1} parent=1 // pred_fallthru
      _
    %327 = vsyncpa [#allocation4], 1

</llo_original>
